<compile_context>
chip_gen: v7x
topology: tpu7x:2x2x1
jax: 0.10.0
libtpu: 0.0.40
codegen_flags: <defaults>
</compile_context>

<pallas_src>
import functools

import jax
import jax.numpy as jnp
import numpy as np
from jax.experimental import pallas as pl
from jax.experimental.pallas import tpu as pltpu

K = 3  # kernel size (stride=1, padding=1 -> "SAME")


def _make_tap_masks(H, W):
    """(K*K, H*W) f32 masks: 1 where tap (dy,dx) reads inside the image, else 0."""
    yy, xx = np.meshgrid(np.arange(H), np.arange(W), indexing="ij")
    masks = []
    for dy in range(K):
        for dx in range(K):
            valid = ((yy + dy - 1 >= 0) & (yy + dy - 1 < H) &
                     (xx + dx - 1 >= 0) & (xx + dx - 1 < W))
            masks.append(valid.reshape(-1).astype(np.float32))
    return jnp.asarray(np.stack(masks, axis=0))


def _pick_batch_tile(N, C, HW, itemsize=4, budget_bytes=4 << 20, max_nb=8):
    """Largest divisor of N (<= max_nb) whose input block fits the VMEM budget."""
    best = 1
    for nb in range(1, min(N, max_nb) + 1):
        if N % nb == 0 and nb * C * HW * itemsize <= budget_bytes:
            best = nb
    return best


def _resblock_kernel(x_ref, w1_ref, s1_ref, b1_ref, w2_ref, s2_ref, b2_ref,
                     m_ref, out_ref, *, H, W, NB, compute_dtype):
    # x_ref  : (NB, Cin, H*W)   NB batch elements; channels on sublanes,
    #                           spatial flattened on the lane axis (lane-dense).
    # w1_ref : (Cmid, K*K*Cin)  conv1 weight, cols ordered (tap-major, in-ch-minor)
    # s1_ref / b1_ref : (Cmid, 1)  folded BN1 scale / shift
    # w2_ref : (Cin, K*K*Cmid)  conv2 weight
    # s2_ref / b2_ref : (Cin, 1)   folded BN2 scale / shift
    # m_ref  : (K*K, H*W)       per-tap border masks
    # out_ref: (NB, Cin, H*W)
    HW = H * W
    masks = m_ref[...]                                   # (9, HW) f32
    # Hoist the per-grid-step constants once (reused across the NB unroll).
    w1 = w1_ref[...].astype(compute_dtype)
    w2 = w2_ref[...].astype(compute_dtype)
    s1, b1 = s1_ref[...], b1_ref[...]
    s2, b2 = s2_ref[...], b2_ref[...]

    def im2col(act):
        # act: (C, HW) -> (K*K*C, HW).  Tap (dy,dx) of a SAME 3x3 conv reads
        # act[y+dy-1, x+dx-1]; on the flat spatial axis that is a static lane
        # roll by (1-dy)*W + (1-dx), with wrapped border lanes zeroed by mask.
        rows = []
        for dy in range(K):
            for dx in range(K):
                t = dy * K + dx
                if dy == 1 and dx == 1:          # centre tap: no shift, no mask
                    rows.append(act)
                    continue
                shift = ((1 - dy) * W + (1 - dx)) % HW
                shifted = pltpu.roll(act, shift, axis=1)
                rows.append(shifted * masks[t:t + 1, :])
        return jnp.concatenate(rows, axis=0)

    for nb in range(NB):                                 # static unroll
        x = x_ref[nb]                                    # (Cin, HW) f32

        # ---- conv1 as one MXU matmul + folded BN + ReLU -------------------
        p1 = im2col(x)                                   # (9*Cin, HW)
        h1 = jnp.dot(w1, p1.astype(compute_dtype),
                     preferred_element_type=jnp.float32)  # (Cmid, HW)
        h1 = jnp.maximum(h1 * s1 + b1, 0.0)

        # ---- conv2 as one MXU matmul + folded BN + ReLU -------------------
        p2 = im2col(h1)                                  # (9*Cmid, HW)
        h2 = jnp.dot(w2, p2.astype(compute_dtype),
                     preferred_element_type=jnp.float32)  # (Cin, HW)
        h2 = jnp.maximum(h2 * s2 + b2, 0.0)

        # ---- residual add: single lane-dense store ------------------------
        out_ref[nb] = x + h2


def resblock_pallas(x_nchw, w1, s1, b1, w2, s2, b2, *,
                    compute_dtype=jnp.float32, batch_tile=None):
    """x_nchw: (N, C, H, W) float32 (PyTorch layout).  Returns (N, C, H, W).

    compute_dtype: dtype of the MXU matmul operands.  float32 for the toy channel
    counts here; pass jnp.bfloat16 at production channel counts on v6e/v7x
    (accumulation stays f32; BN/ReLU/residual stay f32 on the VPU).
    """
    N, C, H, W = x_nchw.shape
    Cmid = w1.shape[3]
    HW = H * W
    NB = batch_tile if batch_tile is not None else _pick_batch_tile(N, C, HW)
    assert N % NB == 0, "batch tile must divide N"

    x_flat = x_nchw.reshape(N, C, HW)            # free reshape, no pad, no transpose
    # HWIO -> (Cout, tap*Cin), matching the im2col row order (tap-major, cin-minor).
    w1_mat = jnp.transpose(w1, (3, 0, 1, 2)).reshape(Cmid, K * K * C)
    w2_mat = jnp.transpose(w2, (3, 0, 1, 2)).reshape(C, K * K * Cmid)
    s1c, b1c = s1.reshape(Cmid, 1), b1.reshape(Cmid, 1)
    s2c, b2c = s2.reshape(C, 1), b2.reshape(C, 1)
    masks = _make_tap_masks(H, W)                # (9, HW)

    const = lambda n: (0, 0)  # constant index_map: fetched once, not per grid step
    grid_spec = pltpu.PrefetchScalarGridSpec(
        num_scalar_prefetch=0,
        grid=(N // NB,),
        in_specs=[
            pl.BlockSpec((NB, C, HW), lambda n: (n, 0, 0)),
            pl.BlockSpec((Cmid, K * K * C), const),
            pl.BlockSpec((Cmid, 1), const),
            pl.BlockSpec((Cmid, 1), const),
            pl.BlockSpec((C, K * K * Cmid), const),
            pl.BlockSpec((C, 1), const),
            pl.BlockSpec((C, 1), const),
            pl.BlockSpec((K * K, HW), const),
        ],
        out_specs=pl.BlockSpec((NB, C, HW), lambda n: (n, 0, 0)),
    )

    kernel = functools.partial(_resblock_kernel, H=H, W=W, NB=NB,
                               compute_dtype=compute_dtype)
    out_flat = pl.pallas_call(
        kernel,
        out_shape=jax.ShapeDtypeStruct((N, C, HW), jnp.float32),
        grid_spec=grid_spec,
        compiler_params=pltpu.CompilerParams(
            dimension_semantics=("parallel",)),
    )(x_flat, w1_mat, s1c, b1c, w2_mat, s2c, b2c, masks)
    return out_flat.reshape(N, C, H, W)


def _fold_bn(conv_bias, gamma, beta, mean, var, eps=1e-5):
    """Fold Conv bias + BatchNorm (eval mode) into per-channel scale/shift."""
    scale = gamma / jnp.sqrt(var + eps)
    shift = (conv_bias - mean) * scale + beta
    return scale, shift


def _conv_bn_relu_ref(x_nchw, w_hwio, scale, shift):
    y = jax.lax.conv_general_dilated(
        x_nchw, w_hwio, window_strides=(1, 1), padding="SAME",
        dimension_numbers=("NCHW", "HWIO", "NCHW"))
    return jnp.maximum(y * scale[None, :, None, None] +
                       shift[None, :, None, None], 0.0)


if __name__ == "__main__":
    # Small shapes consistent with the module: N=2, C=4, H=W=16, Cmid = C//2 = 2
    N, C, H, W = 2, 4, 16, 16
    Cmid = C // 2

    key = jax.random.PRNGKey(0)
    ks = jax.random.split(key, 12)

    # Input in PyTorch NCHW layout (the kernel keeps this layout).
    x_nchw = jax.random.normal(ks[0], (N, C, H, W), dtype=jnp.float32)

    # Deterministic parameters (conv1: C -> C//2, conv2: C//2 -> C), HWIO weights.
    w1 = 0.2 * jax.random.normal(ks[1], (K, K, C, Cmid), dtype=jnp.float32)
    cb1 = 0.1 * jax.random.normal(ks[2], (Cmid,), dtype=jnp.float32)
    g1 = 1.0 + 0.1 * jax.random.normal(ks[3], (Cmid,), dtype=jnp.float32)
    be1 = 0.1 * jax.random.normal(ks[4], (Cmid,), dtype=jnp.float32)
    rm1 = 0.1 * jax.random.normal(ks[5], (Cmid,), dtype=jnp.float32)
    rv1 = jnp.abs(jax.random.normal(ks[6], (Cmid,), dtype=jnp.float32)) + 0.5

    w2 = 0.2 * jax.random.normal(ks[7], (K, K, Cmid, C), dtype=jnp.float32)
    cb2 = 0.1 * jax.random.normal(ks[8], (C,), dtype=jnp.float32)
    g2 = 1.0 + 0.1 * jax.random.normal(ks[9], (C,), dtype=jnp.float32)
    be2 = 0.1 * jax.random.normal(ks[10], (C,), dtype=jnp.float32)
    rm2 = 0.1 * jax.random.normal(ks[11], (C,), dtype=jnp.float32)
    rv2 = jnp.abs(jax.random.normal(ks[0], (C,), dtype=jnp.float32)) + 0.5

    # TODO(synk): training-mode BatchNorm (batch-statistics update) is not
    # implemented; eval-mode BN is folded into per-channel scale/shift.
    s1, b1 = _fold_bn(cb1, g1, be1, rm1, rv1)
    s2, b2 = _fold_bn(cb2, g2, be2, rm2, rv2)

    out = resblock_pallas(x_nchw, w1, s1, b1, w2, s2, b2)
    out = jax.block_until_ready(out)

    # Pure-JAX reference (same folded-BN semantics) for a correctness check.
    ref = x_nchw + _conv_bn_relu_ref(
        _conv_bn_relu_ref(x_nchw, w1, s1, b1), w2, s2, b2)
    np.testing.assert_allclose(np.asarray(out), np.asarray(ref),
                               rtol=1e-4, atol=1e-4)

    print("KERNEL_OK")
</pallas_src>

<mosaic_0001>
module attributes {stable_mosaic.version = 11 : i64} {
  func.func @_resblock_kernel(%arg0: i32, %arg1: memref<2x4x256xf32, #tpu.memory_space<vmem>>, %arg2: memref<2x36xf32, #tpu.memory_space<vmem>>, %arg3: memref<2x1xf32, #tpu.memory_space<vmem>>, %arg4: memref<2x1xf32, #tpu.memory_space<vmem>>, %arg5: memref<4x18xf32, #tpu.memory_space<vmem>>, %arg6: memref<4x1xf32, #tpu.memory_space<vmem>>, %arg7: memref<4x1xf32, #tpu.memory_space<vmem>>, %arg8: memref<9x256xf32, #tpu.memory_space<vmem>>, %arg9: memref<2x4x256xf32, #tpu.memory_space<vmem>>) attributes {dimension_semantics = [#tpu.dimension_semantics<parallel>], iteration_bounds = array<i64: 1>, scalar_prefetch = 0 : i64, scratch_operands = 0 : i64, tpu.core_type = #tpu.core_type<tc>, window_params = [{transform_indices = @transform_0, window_bounds = array<i64: 2, 4, 256>}, {pipeline_mode = #tpu.pipeline_mode<synchronous>, transform_indices = @transform_1, window_bounds = array<i64: 2, 36>}, {pipeline_mode = #tpu.pipeline_mode<synchronous>, transform_indices = @transform_2, window_bounds = array<i64: 2, 1>}, {pipeline_mode = #tpu.pipeline_mode<synchronous>, transform_indices = @transform_3, window_bounds = array<i64: 2, 1>}, {pipeline_mode = #tpu.pipeline_mode<synchronous>, transform_indices = @transform_4, window_bounds = array<i64: 4, 18>}, {pipeline_mode = #tpu.pipeline_mode<synchronous>, transform_indices = @transform_5, window_bounds = array<i64: 4, 1>}, {pipeline_mode = #tpu.pipeline_mode<synchronous>, transform_indices = @transform_6, window_bounds = array<i64: 4, 1>}, {pipeline_mode = #tpu.pipeline_mode<synchronous>, transform_indices = @transform_7, window_bounds = array<i64: 9, 256>}, {transform_indices = @transform_8, window_bounds = array<i64: 2, 4, 256>}]} {
    %c0 = arith.constant 0 : index
    %c0_0 = arith.constant 0 : index
    %0 = vector.load %arg8[%c0, %c0_0] : memref<9x256xf32, #tpu.memory_space<vmem>>, vector<9x256xf32>
    %c0_1 = arith.constant 0 : index
    %c0_2 = arith.constant 0 : index
    %1 = vector.load %arg2[%c0_1, %c0_2] : memref<2x36xf32, #tpu.memory_space<vmem>>, vector<2x36xf32>
    %c0_3 = arith.constant 0 : index
    %c0_4 = arith.constant 0 : index
    %2 = vector.load %arg5[%c0_3, %c0_4] : memref<4x18xf32, #tpu.memory_space<vmem>>, vector<4x18xf32>
    %c0_5 = arith.constant 0 : index
    %c0_6 = arith.constant 0 : index
    %3 = vector.load %arg3[%c0_5, %c0_6] : memref<2x1xf32, #tpu.memory_space<vmem>>, vector<2x1xf32>
    %c0_7 = arith.constant 0 : index
    %c0_8 = arith.constant 0 : index
    %4 = vector.load %arg4[%c0_7, %c0_8] : memref<2x1xf32, #tpu.memory_space<vmem>>, vector<2x1xf32>
    %c0_9 = arith.constant 0 : index
    %c0_10 = arith.constant 0 : index
    %5 = vector.load %arg6[%c0_9, %c0_10] : memref<4x1xf32, #tpu.memory_space<vmem>>, vector<4x1xf32>
    %c0_11 = arith.constant 0 : index
    %c0_12 = arith.constant 0 : index
    %6 = vector.load %arg7[%c0_11, %c0_12] : memref<4x1xf32, #tpu.memory_space<vmem>>, vector<4x1xf32>
    %c0_13 = arith.constant 0 : index
    %c0_14 = arith.constant 0 : index
    %c0_15 = arith.constant 0 : index
    %7 = vector.load %arg1[%c0_13, %c0_14, %c0_15] : memref<2x4x256xf32, #tpu.memory_space<vmem>>, vector<1x4x256xf32>
    %8 = vector.shape_cast %7 : vector<1x4x256xf32> to vector<4x256xf32>
    %c17_i32 = arith.constant 17 : i32
    %9 = tpu.dynamic_rotate %8 by %c17_i32 dim 1 : vector<4x256xf32>, i32 -> vector<4x256xf32>
    %10 = vector.extract_strided_slice %0 {offsets = [0, 0], sizes = [1, 256], strides = [1, 1]} : vector<9x256xf32> to vector<1x256xf32>
    %11 = vector.broadcast %10 : vector<1x256xf32> to vector<4x256xf32>
    %12 = arith.mulf %9, %11 : vector<4x256xf32>
    %c16_i32 = arith.constant 16 : i32
    %13 = tpu.dynamic_rotate %8 by %c16_i32 dim 1 : vector<4x256xf32>, i32 -> vector<4x256xf32>
    %14 = vector.extract_strided_slice %0 {offsets = [1, 0], sizes = [1, 256], strides = [1, 1]} : vector<9x256xf32> to vector<1x256xf32>
    %15 = vector.broadcast %14 : vector<1x256xf32> to vector<4x256xf32>
    %16 = arith.mulf %13, %15 : vector<4x256xf32>
    %c15_i32 = arith.constant 15 : i32
    %17 = tpu.dynamic_rotate %8 by %c15_i32 dim 1 : vector<4x256xf32>, i32 -> vector<4x256xf32>
    %18 = vector.extract_strided_slice %0 {offsets = [2, 0], sizes = [1, 256], strides = [1, 1]} : vector<9x256xf32> to vector<1x256xf32>
    %19 = vector.broadcast %18 : vector<1x256xf32> to vector<4x256xf32>
    %20 = arith.mulf %17, %19 : vector<4x256xf32>
    %c1_i32 = arith.constant 1 : i32
    %21 = tpu.dynamic_rotate %8 by %c1_i32 dim 1 : vector<4x256xf32>, i32 -> vector<4x256xf32>
    %22 = vector.extract_strided_slice %0 {offsets = [3, 0], sizes = [1, 256], strides = [1, 1]} : vector<9x256xf32> to vector<1x256xf32>
    %23 = vector.broadcast %22 : vector<1x256xf32> to vector<4x256xf32>
    %24 = arith.mulf %21, %23 : vector<4x256xf32>
    %c255_i32 = arith.constant 255 : i32
    %25 = tpu.dynamic_rotate %8 by %c255_i32 dim 1 : vector<4x256xf32>, i32 -> vector<4x256xf32>
    %26 = vector.extract_strided_slice %0 {offsets = [5, 0], sizes = [1, 256], strides = [1, 1]} : vector<9x256xf32> to vector<1x256xf32>
    %27 = vector.broadcast %26 : vector<1x256xf32> to vector<4x256xf32>
    %28 = arith.mulf %25, %27 : vector<4x256xf32>
    %c241_i32 = arith.constant 241 : i32
    %29 = tpu.dynamic_rotate %8 by %c241_i32 dim 1 : vector<4x256xf32>, i32 -> vector<4x256xf32>
    %30 = vector.extract_strided_slice %0 {offsets = [6, 0], sizes = [1, 256], strides = [1, 1]} : vector<9x256xf32> to vector<1x256xf32>
    %31 = vector.broadcast %30 : vector<1x256xf32> to vector<4x256xf32>
    %32 = arith.mulf %29, %31 : vector<4x256xf32>
    %c240_i32 = arith.constant 240 : i32
    %33 = tpu.dynamic_rotate %8 by %c240_i32 dim 1 : vector<4x256xf32>, i32 -> vector<4x256xf32>
    %34 = vector.extract_strided_slice %0 {offsets = [7, 0], sizes = [1, 256], strides = [1, 1]} : vector<9x256xf32> to vector<1x256xf32>
    %35 = vector.broadcast %34 : vector<1x256xf32> to vector<4x256xf32>
    %36 = arith.mulf %33, %35 : vector<4x256xf32>
    %c239_i32 = arith.constant 239 : i32
    %37 = tpu.dynamic_rotate %8 by %c239_i32 dim 1 : vector<4x256xf32>, i32 -> vector<4x256xf32>
    %38 = vector.extract_strided_slice %0 {offsets = [8, 0], sizes = [1, 256], strides = [1, 1]} : vector<9x256xf32> to vector<1x256xf32>
    %39 = vector.broadcast %38 : vector<1x256xf32> to vector<4x256xf32>
    %40 = arith.mulf %37, %39 : vector<4x256xf32>
    %41 = tpu.concatenate %12, %16, %20, %24, %8, %28, %32, %36, %40 in 0 : vector<4x256xf32>, vector<4x256xf32>, vector<4x256xf32>, vector<4x256xf32>, vector<4x256xf32>, vector<4x256xf32>, vector<4x256xf32>, vector<4x256xf32>, vector<4x256xf32> -> vector<36x256xf32>
    %cst = arith.constant dense<0.000000e+00> : vector<2x256xf32>
    %42 = tpu.matmul %1, %41, %cst {dimension_numbers = #tpu.dot_dimension_numbers<[1], [0], [0], [1], [0, 0, 1, 1], [], []>} : vector<2x36xf32>, vector<36x256xf32>, vector<2x256xf32> -> vector<2x256xf32>
    %43 = vector.broadcast %3 : vector<2x1xf32> to vector<2x256xf32>
    %44 = arith.mulf %42, %43 : vector<2x256xf32>
    %45 = vector.broadcast %4 : vector<2x1xf32> to vector<2x256xf32>
    %46 = arith.addf %44, %45 : vector<2x256xf32>
    %cst_16 = arith.constant 0.000000e+00 : f32
    %47 = vector.broadcast %cst_16 : f32 to vector<2x256xf32>
    %48 = arith.maximumf %46, %47 : vector<2x256xf32>
    %c17_i32_17 = arith.constant 17 : i32
    %49 = tpu.dynamic_rotate %48 by %c17_i32_17 dim 1 : vector<2x256xf32>, i32 -> vector<2x256xf32>
    %50 = vector.extract_strided_slice %0 {offsets = [0, 0], sizes = [1, 256], strides = [1, 1]} : vector<9x256xf32> to vector<1x256xf32>
    %51 = vector.broadcast %50 : vector<1x256xf32> to vector<2x256xf32>
    %52 = arith.mulf %49, %51 : vector<2x256xf32>
    %c16_i32_18 = arith.constant 16 : i32
    %53 = tpu.dynamic_rotate %48 by %c16_i32_18 dim 1 : vector<2x256xf32>, i32 -> vector<2x256xf32>
    %54 = vector.extract_strided_slice %0 {offsets = [1, 0], sizes = [1, 256], strides = [1, 1]} : vector<9x256xf32> to vector<1x256xf32>
    %55 = vector.broadcast %54 : vector<1x256xf32> to vector<2x256xf32>
    %56 = arith.mulf %53, %55 : vector<2x256xf32>
    %c15_i32_19 = arith.constant 15 : i32
    %57 = tpu.dynamic_rotate %48 by %c15_i32_19 dim 1 : vector<2x256xf32>, i32 -> vector<2x256xf32>
    %58 = vector.extract_strided_slice %0 {offsets = [2, 0], sizes = [1, 256], strides = [1, 1]} : vector<9x256xf32> to vector<1x256xf32>
    %59 = vector.broadcast %58 : vector<1x256xf32> to vector<2x256xf32>
    %60 = arith.mulf %57, %59 : vector<2x256xf32>
    %c1_i32_20 = arith.constant 1 : i32
    %61 = tpu.dynamic_rotate %48 by %c1_i32_20 dim 1 : vector<2x256xf32>, i32 -> vector<2x256xf32>
    %62 = vector.extract_strided_slice %0 {offsets = [3, 0], sizes = [1, 256], strides = [1, 1]} : vector<9x256xf32> to vector<1x256xf32>
    %63 = vector.broadcast %62 : vector<1x256xf32> to vector<2x256xf32>
    %64 = arith.mulf %61, %63 : vector<2x256xf32>
    %c255_i32_21 = arith.constant 255 : i32
    %65 = tpu.dynamic_rotate %48 by %c255_i32_21 dim 1 : vector<2x256xf32>, i32 -> vector<2x256xf32>
    %66 = vector.extract_strided_slice %0 {offsets = [5, 0], sizes = [1, 256], strides = [1, 1]} : vector<9x256xf32> to vector<1x256xf32>
    %67 = vector.broadcast %66 : vector<1x256xf32> to vector<2x256xf32>
    %68 = arith.mulf %65, %67 : vector<2x256xf32>
    %c241_i32_22 = arith.constant 241 : i32
    %69 = tpu.dynamic_rotate %48 by %c241_i32_22 dim 1 : vector<2x256xf32>, i32 -> vector<2x256xf32>
    %70 = vector.extract_strided_slice %0 {offsets = [6, 0], sizes = [1, 256], strides = [1, 1]} : vector<9x256xf32> to vector<1x256xf32>
    %71 = vector.broadcast %70 : vector<1x256xf32> to vector<2x256xf32>
    %72 = arith.mulf %69, %71 : vector<2x256xf32>
    %c240_i32_23 = arith.constant 240 : i32
    %73 = tpu.dynamic_rotate %48 by %c240_i32_23 dim 1 : vector<2x256xf32>, i32 -> vector<2x256xf32>
    %74 = vector.extract_strided_slice %0 {offsets = [7, 0], sizes = [1, 256], strides = [1, 1]} : vector<9x256xf32> to vector<1x256xf32>
    %75 = vector.broadcast %74 : vector<1x256xf32> to vector<2x256xf32>
    %76 = arith.mulf %73, %75 : vector<2x256xf32>
    %c239_i32_24 = arith.constant 239 : i32
    %77 = tpu.dynamic_rotate %48 by %c239_i32_24 dim 1 : vector<2x256xf32>, i32 -> vector<2x256xf32>
    %78 = vector.extract_strided_slice %0 {offsets = [8, 0], sizes = [1, 256], strides = [1, 1]} : vector<9x256xf32> to vector<1x256xf32>
    %79 = vector.broadcast %78 : vector<1x256xf32> to vector<2x256xf32>
    %80 = arith.mulf %77, %79 : vector<2x256xf32>
    %81 = tpu.concatenate %52, %56, %60, %64, %48, %68, %72, %76, %80 in 0 : vector<2x256xf32>, vector<2x256xf32>, vector<2x256xf32>, vector<2x256xf32>, vector<2x256xf32>, vector<2x256xf32>, vector<2x256xf32>, vector<2x256xf32>, vector<2x256xf32> -> vector<18x256xf32>
    %cst_25 = arith.constant dense<0.000000e+00> : vector<4x256xf32>
    %82 = tpu.matmul %2, %81, %cst_25 {dimension_numbers = #tpu.dot_dimension_numbers<[1], [0], [0], [1], [0, 0, 1, 1], [], []>} : vector<4x18xf32>, vector<18x256xf32>, vector<4x256xf32> -> vector<4x256xf32>
    %83 = vector.broadcast %5 : vector<4x1xf32> to vector<4x256xf32>
    %84 = arith.mulf %82, %83 : vector<4x256xf32>
    %85 = vector.broadcast %6 : vector<4x1xf32> to vector<4x256xf32>
    %86 = arith.addf %84, %85 : vector<4x256xf32>
    %cst_26 = arith.constant 0.000000e+00 : f32
    %87 = vector.broadcast %cst_26 : f32 to vector<4x256xf32>
    %88 = arith.maximumf %86, %87 : vector<4x256xf32>
    %89 = arith.addf %8, %88 : vector<4x256xf32>
    %c0_27 = arith.constant 0 : index
    %c0_28 = arith.constant 0 : index
    %c0_29 = arith.constant 0 : index
    %90 = vector.load %arg9[%c0_27, %c0_28, %c0_29] : memref<2x4x256xf32, #tpu.memory_space<vmem>>, vector<1x4x256xf32>
    %91 = vector.shape_cast %90 : vector<1x4x256xf32> to vector<4x256xf32>
    %92 = vector.shape_cast %89 : vector<4x256xf32> to vector<1x4x256xf32>
    tpu.vector_store %arg9[%c0_27, %c0_28, %c0_29], %92 {strides = array<i32>} : memref<2x4x256xf32, #tpu.memory_space<vmem>>, vector<1x4x256xf32>,
    %c1 = arith.constant 1 : index
    %c0_30 = arith.constant 0 : index
    %c0_31 = arith.constant 0 : index
    %93 = vector.load %arg1[%c1, %c0_30, %c0_31] : memref<2x4x256xf32, #tpu.memory_space<vmem>>, vector<1x4x256xf32>
    %94 = vector.shape_cast %93 : vector<1x4x256xf32> to vector<4x256xf32>
    %c17_i32_32 = arith.constant 17 : i32
    %95 = tpu.dynamic_rotate %94 by %c17_i32_32 dim 1 : vector<4x256xf32>, i32 -> vector<4x256xf32>
    %96 = vector.extract_strided_slice %0 {offsets = [0, 0], sizes = [1, 256], strides = [1, 1]} : vector<9x256xf32> to vector<1x256xf32>
    %97 = vector.broadcast %96 : vector<1x256xf32> to vector<4x256xf32>
    %98 = arith.mulf %95, %97 : vector<4x256xf32>
    %c16_i32_33 = arith.constant 16 : i32
    %99 = tpu.dynamic_rotate %94 by %c16_i32_33 dim 1 : vector<4x256xf32>, i32 -> vector<4x256xf32>
    %100 = vector.extract_strided_slice %0 {offsets = [1, 0], sizes = [1, 256], strides = [1, 1]} : vector<9x256xf32> to vector<1x256xf32>
    %101 = vector.broadcast %100 : vector<1x256xf32> to vector<4x256xf32>
    %102 = arith.mulf %99, %101 : vector<4x256xf32>
    %c15_i32_34 = arith.constant 15 : i32
    %103 = tpu.dynamic_rotate %94 by %c15_i32_34 dim 1 : vector<4x256xf32>, i32 -> vector<4x256xf32>
    %104 = vector.extract_strided_slice %0 {offsets = [2, 0], sizes = [1, 256], strides = [1, 1]} : vector<9x256xf32> to vector<1x256xf32>
    %105 = vector.broadcast %104 : vector<1x256xf32> to vector<4x256xf32>
    %106 = arith.mulf %103, %105 : vector<4x256xf32>
    %c1_i32_35 = arith.constant 1 : i32
    %107 = tpu.dynamic_rotate %94 by %c1_i32_35 dim 1 : vector<4x256xf32>, i32 -> vector<4x256xf32>
    %108 = vector.extract_strided_slice %0 {offsets = [3, 0], sizes = [1, 256], strides = [1, 1]} : vector<9x256xf32> to vector<1x256xf32>
    %109 = vector.broadcast %108 : vector<1x256xf32> to vector<4x256xf32>
    %110 = arith.mulf %107, %109 : vector<4x256xf32>
    %c255_i32_36 = arith.constant 255 : i32
    %111 = tpu.dynamic_rotate %94 by %c255_i32_36 dim 1 : vector<4x256xf32>, i32 -> vector<4x256xf32>
    %112 = vector.extract_strided_slice %0 {offsets = [5, 0], sizes = [1, 256], strides = [1, 1]} : vector<9x256xf32> to vector<1x256xf32>
    %113 = vector.broadcast %112 : vector<1x256xf32> to vector<4x256xf32>
    %114 = arith.mulf %111, %113 : vector<4x256xf32>
    %c241_i32_37 = arith.constant 241 : i32
    %115 = tpu.dynamic_rotate %94 by %c241_i32_37 dim 1 : vector<4x256xf32>, i32 -> vector<4x256xf32>
    %116 = vector.extract_strided_slice %0 {offsets = [6, 0], sizes = [1, 256], strides = [1, 1]} : vector<9x256xf32> to vector<1x256xf32>
    %117 = vector.broadcast %116 : vector<1x256xf32> to vector<4x256xf32>
    %118 = arith.mulf %115, %117 : vector<4x256xf32>
    %c240_i32_38 = arith.constant 240 : i32
    %119 = tpu.dynamic_rotate %94 by %c240_i32_38 dim 1 : vector<4x256xf32>, i32 -> vector<4x256xf32>
    %120 = vector.extract_strided_slice %0 {offsets = [7, 0], sizes = [1, 256], strides = [1, 1]} : vector<9x256xf32> to vector<1x256xf32>
    %121 = vector.broadcast %120 : vector<1x256xf32> to vector<4x256xf32>
    %122 = arith.mulf %119, %121 : vector<4x256xf32>
    %c239_i32_39 = arith.constant 239 : i32
    %123 = tpu.dynamic_rotate %94 by %c239_i32_39 dim 1 : vector<4x256xf32>, i32 -> vector<4x256xf32>
    %124 = vector.extract_strided_slice %0 {offsets = [8, 0], sizes = [1, 256], strides = [1, 1]} : vector<9x256xf32> to vector<1x256xf32>
    %125 = vector.broadcast %124 : vector<1x256xf32> to vector<4x256xf32>
    %126 = arith.mulf %123, %125 : vector<4x256xf32>
    %127 = tpu.concatenate %98, %102, %106, %110, %94, %114, %118, %122, %126 in 0 : vector<4x256xf32>, vector<4x256xf32>, vector<4x256xf32>, vector<4x256xf32>, vector<4x256xf32>, vector<4x256xf32>, vector<4x256xf32>, vector<4x256xf32>, vector<4x256xf32> -> vector<36x256xf32>
    %cst_40 = arith.constant dense<0.000000e+00> : vector<2x256xf32>
    %128 = tpu.matmul %1, %127, %cst_40 {dimension_numbers = #tpu.dot_dimension_numbers<[1], [0], [0], [1], [0, 0, 1, 1], [], []>} : vector<2x36xf32>, vector<36x256xf32>, vector<2x256xf32> -> vector<2x256xf32>
    %129 = vector.broadcast %3 : vector<2x1xf32> to vector<2x256xf32>
    %130 = arith.mulf %128, %129 : vector<2x256xf32>
    %131 = vector.broadcast %4 : vector<2x1xf32> to vector<2x256xf32>
    %132 = arith.addf %130, %131 : vector<2x256xf32>
    %cst_41 = arith.constant 0.000000e+00 : f32
    %133 = vector.broadcast %cst_41 : f32 to vector<2x256xf32>
    %134 = arith.maximumf %132, %133 : vector<2x256xf32>
    %c17_i32_42 = arith.constant 17 : i32
    %135 = tpu.dynamic_rotate %134 by %c17_i32_42 dim 1 : vector<2x256xf32>, i32 -> vector<2x256xf32>
    %136 = vector.extract_strided_slice %0 {offsets = [0, 0], sizes = [1, 256], strides = [1, 1]} : vector<9x256xf32> to vector<1x256xf32>
    %137 = vector.broadcast %136 : vector<1x256xf32> to vector<2x256xf32>
    %138 = arith.mulf %135, %137 : vector<2x256xf32>
    %c16_i32_43 = arith.constant 16 : i32
    %139 = tpu.dynamic_rotate %134 by %c16_i32_43 dim 1 : vector<2x256xf32>, i32 -> vector<2x256xf32>
    %140 = vector.extract_strided_slice %0 {offsets = [1, 0], sizes = [1, 256], strides = [1, 1]} : vector<9x256xf32> to vector<1x256xf32>
    %141 = vector.broadcast %140 : vector<1x256xf32> to vector<2x256xf32>
    %142 = arith.mulf %139, %141 : vector<2x256xf32>
    %c15_i32_44 = arith.constant 15 : i32
    %143 = tpu.dynamic_rotate %134 by %c15_i32_44 dim 1 : vector<2x256xf32>, i32 -> vector<2x256xf32>
    %144 = vector.extract_strided_slice %0 {offsets = [2, 0], sizes = [1, 256], strides = [1, 1]} : vector<9x256xf32> to vector<1x256xf32>
    %145 = vector.broadcast %144 : vector<1x256xf32> to vector<2x256xf32>
    %146 = arith.mulf %143, %145 : vector<2x256xf32>
    %c1_i32_45 = arith.constant 1 : i32
    %147 = tpu.dynamic_rotate %134 by %c1_i32_45 dim 1 : vector<2x256xf32>, i32 -> vector<2x256xf32>
    %148 = vector.extract_strided_slice %0 {offsets = [3, 0], sizes = [1, 256], strides = [1, 1]} : vector<9x256xf32> to vector<1x256xf32>
    %149 = vector.broadcast %148 : vector<1x256xf32> to vector<2x256xf32>
    %150 = arith.mulf %147, %149 : vector<2x256xf32>
    %c255_i32_46 = arith.constant 255 : i32
    %151 = tpu.dynamic_rotate %134 by %c255_i32_46 dim 1 : vector<2x256xf32>, i32 -> vector<2x256xf32>
    %152 = vector.extract_strided_slice %0 {offsets = [5, 0], sizes = [1, 256], strides = [1, 1]} : vector<9x256xf32> to vector<1x256xf32>
    %153 = vector.broadcast %152 : vector<1x256xf32> to vector<2x256xf32>
    %154 = arith.mulf %151, %153 : vector<2x256xf32>
    %c241_i32_47 = arith.constant 241 : i32
    %155 = tpu.dynamic_rotate %134 by %c241_i32_47 dim 1 : vector<2x256xf32>, i32 -> vector<2x256xf32>
    %156 = vector.extract_strided_slice %0 {offsets = [6, 0], sizes = [1, 256], strides = [1, 1]} : vector<9x256xf32> to vector<1x256xf32>
    %157 = vector.broadcast %156 : vector<1x256xf32> to vector<2x256xf32>
    %158 = arith.mulf %155, %157 : vector<2x256xf32>
    %c240_i32_48 = arith.constant 240 : i32
    %159 = tpu.dynamic_rotate %134 by %c240_i32_48 dim 1 : vector<2x256xf32>, i32 -> vector<2x256xf32>
    %160 = vector.extract_strided_slice %0 {offsets = [7, 0], sizes = [1, 256], strides = [1, 1]} : vector<9x256xf32> to vector<1x256xf32>
    %161 = vector.broadcast %160 : vector<1x256xf32> to vector<2x256xf32>
    %162 = arith.mulf %159, %161 : vector<2x256xf32>
    %c239_i32_49 = arith.constant 239 : i32
    %163 = tpu.dynamic_rotate %134 by %c239_i32_49 dim 1 : vector<2x256xf32>, i32 -> vector<2x256xf32>
    %164 = vector.extract_strided_slice %0 {offsets = [8, 0], sizes = [1, 256], strides = [1, 1]} : vector<9x256xf32> to vector<1x256xf32>
    %165 = vector.broadcast %164 : vector<1x256xf32> to vector<2x256xf32>
    %166 = arith.mulf %163, %165 : vector<2x256xf32>
    %167 = tpu.concatenate %138, %142, %146, %150, %134, %154, %158, %162, %166 in 0 : vector<2x256xf32>, vector<2x256xf32>, vector<2x256xf32>, vector<2x256xf32>, vector<2x256xf32>, vector<2x256xf32>, vector<2x256xf32>, vector<2x256xf32>, vector<2x256xf32> -> vector<18x256xf32>
    %cst_50 = arith.constant dense<0.000000e+00> : vector<4x256xf32>
    %168 = tpu.matmul %2, %167, %cst_50 {dimension_numbers = #tpu.dot_dimension_numbers<[1], [0], [0], [1], [0, 0, 1, 1], [], []>} : vector<4x18xf32>, vector<18x256xf32>, vector<4x256xf32> -> vector<4x256xf32>
    %169 = vector.broadcast %5 : vector<4x1xf32> to vector<4x256xf32>
    %170 = arith.mulf %168, %169 : vector<4x256xf32>
    %171 = vector.broadcast %6 : vector<4x1xf32> to vector<4x256xf32>
    %172 = arith.addf %170, %171 : vector<4x256xf32>
    %cst_51 = arith.constant 0.000000e+00 : f32
    %173 = vector.broadcast %cst_51 : f32 to vector<4x256xf32>
    %174 = arith.maximumf %172, %173 : vector<4x256xf32>
    %175 = arith.addf %94, %174 : vector<4x256xf32>
    %c1_52 = arith.constant 1 : index
    %c0_53 = arith.constant 0 : index
    %c0_54 = arith.constant 0 : index
    %176 = vector.load %arg9[%c1_52, %c0_53, %c0_54] : memref<2x4x256xf32, #tpu.memory_space<vmem>>, vector<1x4x256xf32>
    %177 = vector.shape_cast %176 : vector<1x4x256xf32> to vector<4x256xf32>
    %178 = vector.shape_cast %175 : vector<4x256xf32> to vector<1x4x256xf32>
    tpu.vector_store %arg9[%c1_52, %c0_53, %c0_54], %178 {strides = array<i32>} : memref<2x4x256xf32, #tpu.memory_space<vmem>>, vector<1x4x256xf32>,
    return
  }
  func.func @transform_0(%arg0: i32) -> (i32, i32, i32) {
    %c0_i32 = arith.constant 0 : i32
    %c0_i32_0 = arith.constant 0 : i32
    %c0_i32_1 = arith.constant 0 : i32
    return %arg0, %c0_i32, %c0_i32_0 : i32, i32, i32
  }
  func.func @transform_1(%arg0: i32) -> (i32, i32) {
    %c0_i32 = arith.constant 0 : i32
    %c0_i32_0 = arith.constant 0 : i32
    %c0_i32_1 = arith.constant 0 : i32
    return %c0_i32, %c0_i32_0 : i32, i32
  }
  func.func @transform_2(%arg0: i32) -> (i32, i32) {
    %c0_i32 = arith.constant 0 : i32
    %c0_i32_0 = arith.constant 0 : i32
    %c0_i32_1 = arith.constant 0 : i32
    return %c0_i32, %c0_i32_0 : i32, i32
  }
  func.func @transform_3(%arg0: i32) -> (i32, i32) {
    %c0_i32 = arith.constant 0 : i32
    %c0_i32_0 = arith.constant 0 : i32
    %c0_i32_1 = arith.constant 0 : i32
    return %c0_i32, %c0_i32_0 : i32, i32
  }
  func.func @transform_4(%arg0: i32) -> (i32, i32) {
    %c0_i32 = arith.constant 0 : i32
    %c0_i32_0 = arith.constant 0 : i32
    %c0_i32_1 = arith.constant 0 : i32
    return %c0_i32, %c0_i32_0 : i32, i32
  }
  func.func @transform_5(%arg0: i32) -> (i32, i32) {
    %c0_i32 = arith.constant 0 : i32
    %c0_i32_0 = arith.constant 0 : i32
    %c0_i32_1 = arith.constant 0 : i32
    return %c0_i32, %c0_i32_0 : i32, i32
  }
  func.func @transform_6(%arg0: i32) -> (i32, i32) {
    %c0_i32 = arith.constant 0 : i32
    %c0_i32_0 = arith.constant 0 : i32
    %c0_i32_1 = arith.constant 0 : i32
    return %c0_i32, %c0_i32_0 : i32, i32
  }
  func.func @transform_7(%arg0: i32) -> (i32, i32) {
    %c0_i32 = arith.constant 0 : i32
    %c0_i32_0 = arith.constant 0 : i32
    %c0_i32_1 = arith.constant 0 : i32
    return %c0_i32, %c0_i32_0 : i32, i32
  }
  func.func @transform_8(%arg0: i32) -> (i32, i32, i32) {
    %c0_i32 = arith.constant 0 : i32
    %c0_i32_0 = arith.constant 0 : i32
    %c0_i32_1 = arith.constant 0 : i32
    return %arg0, %c0_i32, %c0_i32_0 : i32, i32, i32
  }
}

</mosaic_0001>

<llo_original>
// kernel: tpu_custom_call.1
$region0: #{tpu_custom_call.1}
  #allocation0 [shape = 'u32[]', space=smem, size = 0x4, offset = 0x4, fixed_abs, tag = 'smem constant byte address 0x4 - core index']
  #allocation1 [shape = 'u32[144,128]{1,0:T(1,128)}', space=vmem, size = 0x12000, scoped, tag = 'internal scratch']
  %s0 = inlined_call_operand.hbm [shape: f32[2,4,256], index: 0, kind: input, shape index: {}]
  %s1 = inlined_call_operand.vmem [shape: f32[2,36], index: 1, kind: input, shape index: {}]
  %s2 = inlined_call_operand.vmem [shape: f32[2,1], index: 2, kind: input, shape index: {}]
  %s3 = inlined_call_operand.vmem [shape: f32[2,1], index: 3, kind: input, shape index: {}]
  %s4 = inlined_call_operand.vmem [shape: f32[4,18], index: 4, kind: input, shape index: {}]
  %s5 = inlined_call_operand.vmem [shape: f32[4,1], index: 5, kind: input, shape index: {}]
  %s6 = inlined_call_operand.vmem [shape: f32[4,1], index: 6, kind: input, shape index: {}]
  %s7 = inlined_call_operand.vmem [shape: f32[9,256], index: 7, kind: input, shape index: {}]
  %s8 = inlined_call_operand.hbm [shape: f32[2,4,256], index: 8, kind: output, shape index: {}]
  %s9 = sld [smem:[#allocation0]]
  $region46: #{tpu_custom_call.1} parent=0
    _
  %s11 = ssub.s32 1, %s9
  %s12 = scalar_select 0, %s11, %s9
  $region1: #{tpu_custom_call.1} parent=0
    #allocation2 [shape = 'u8[8192]{0}', space=vmem, size = 0x2000, scoped, tag = 'input window, operand 0, single buffered']
    #allocation3 [shape = 's32[1]{0}', space=sflag, size = 0x4, scoped, tag = 'scoped memory for tpu_custom_call.1']
    #allocation4 [shape = 's32[1]{0}', space=sflag, size = 0x4, scoped, tag = 'scoped memory for tpu_custom_call.1']
    #allocation5 [shape = 'u8[8192]{0}', space=vmem, size = 0x2000, scoped, tag = 'output window, operand 0, single buffered']
    %13 = vsyncpa [#allocation3], 0
    %14 = vsyncpa [#allocation4], 0
    // Predicated region
    $region2: #{tpu_custom_call.1} parent=1 // pred_check
      _
    $region3: #{tpu_custom_call.1} parent=1 // pred_check_branch
      %16 = sbr.rel (0) target = $region5
    $region4: #{tpu_custom_call.1} parent=1 // pred_region
      %s18 = ssub.s32 256, 256
      %19 = vsyncadd [#allocation3], %s18
      %s20 = sshll.u32 [#allocation2], 4
      %s21 = int_to_ptr.vmem [resolvable:$true] %s20
      %26 = dma.hbm_to_vmem [thread:$0]  %s0, 256, %s21, [#allocation3], 128, 128, 8
    $region5: #{tpu_custom_call.1} parent=1 // pred_fallthru
      _
    // Predicated region
    $region6: #{tpu_custom_call.1} parent=1 // pred_check
      _
    $region7: #{tpu_custom_call.1} parent=1 // pred_check_branch
      %28 = sbr.rel (0) target = $region9
    $region8: #{tpu_custom_call.1} parent=1 // pred_region
      _
    $region9: #{tpu_custom_call.1} parent=1 // pred_fallthru
      _
    // Predicated region
    $region10: #{tpu_custom_call.1} parent=1 // pred_check
      _
    $region11: #{tpu_custom_call.1} parent=1 // pred_check_branch
      %30 = sbr.rel (0) target = $region13
    $region12: #{tpu_custom_call.1} parent=1 // pred_region
      _
    $region13: #{tpu_custom_call.1} parent=1 // pred_fallthru
      _
    // Predicated region
    $region14: #{tpu_custom_call.1} parent=1 // pred_check
      _
    $region15: #{tpu_custom_call.1} parent=1 // pred_check_branch
      %32 = sbr.rel (0) target = $region17
    $region16: #{tpu_custom_call.1} parent=1 // pred_region
      _
    $region17: #{tpu_custom_call.1} parent=1 // pred_fallthru
      _
    // Predicated region
    $region18: #{tpu_custom_call.1} parent=1 // pred_check
      _
    $region19: #{tpu_custom_call.1} parent=1 // pred_check_branch
      %34 = sbr.rel (0) target = $region21
    $region20: #{tpu_custom_call.1} parent=1 // pred_region
      _
    $region21: #{tpu_custom_call.1} parent=1 // pred_fallthru
      _
    // Predicated region
    $region22: #{tpu_custom_call.1} parent=1 // pred_check
      _
    $region23: #{tpu_custom_call.1} parent=1 // pred_check_branch
      %36 = sbr.rel (0) target = $region25
    $region24: #{tpu_custom_call.1} parent=1 // pred_region
      _
    $region25: #{tpu_custom_call.1} parent=1 // pred_fallthru
      _
    // Predicated region
    $region26: #{tpu_custom_call.1} parent=1 // pred_check
      _
    $region27: #{tpu_custom_call.1} parent=1 // pred_check_branch
      %38 = sbr.rel (0) target = $region29
    $region28: #{tpu_custom_call.1} parent=1 // pred_region
      _
    $region29: #{tpu_custom_call.1} parent=1 // pred_fallthru
      _
    // Predicated region
    $region30: #{tpu_custom_call.1} parent=1 // pred_check
      _
    $region31: #{tpu_custom_call.1} parent=1 // pred_check_branch
      %40 = sbr.rel (0) target = $region33
    $region32: #{tpu_custom_call.1} parent=1 // pred_region
      _
    $region33: #{tpu_custom_call.1} parent=1 // pred_fallthru
      _
    // Predicated region
    $region34: #{tpu_custom_call.1} parent=1 // pred_check
      _
    $region35: #{tpu_custom_call.1} parent=1 // pred_check_branch
      %42 = sbr.rel (0) target = $region37
    $region36: #{tpu_custom_call.1} parent=1 // pred_region
      %43 = dma.done [#allocation3], 256
    $region37: #{tpu_custom_call.1} parent=1 // pred_fallthru
      _
    %v44 = vld [vmem:[%s7] sm:$0xff]
    %v45 = vld [vmem:[%s7 + $0x8] sm:$0xff]
    %v46 = vld [vmem:[%s7 + $0x10] sm:$0x1]
    %v47 = vld [vmem:[%s7 + $0x18] sm:$0x1]
    %v48 = vld [vmem:[%s1] sm:$0x3]
    %v49 = vld [vmem:[%s4] sm:$0xf]
    %v50 = vld [vmem:[%s2] sm:$0x3]
    %v51 = vld [vmem:[%s3] sm:$0x3]
    %v52 = vld [vmem:[%s5] sm:$0xf]
    %v53 = vld [vmem:[%s6] sm:$0xf]
    %v54 = vld [vmem:[#allocation2] sm:$0xff]
    %v56 = vcombine.high %v54, %v54
    %58 = vrot.lane.b32.xlu0 %v54, 17
    %v59 = vpop.permute.xlu0 %58
    %60 = vrot.lane.b32.xlu0 %v56, 17
    %v61 = vpop.permute.xlu0 %60
    %v62 = vlaneseq
    %v63 = vand.u32 %v62, 127
    %vm64 = vcmp.lt.s32.totalorder %v63, 17
    %v65 = vsel %vm64, %v59, %v61
    %v66 = vsel %vm64, %v61, %v59
    %v67 = vlaneseq
    %v68 = vshrl.u32 %v67, 7
    %v69 = vsub.s32 0, %v68
    %v70 = vrot.slane %v44, %v69
    %v71 = vlaneseq
    %v72 = vshrl.u32 %v71, 7
    %v73 = vsub.s32 0, %v72
    %v74 = vrot.slane %v45, %v73
    %v75 = vmul.f32 %v66, %v70
    %v76 = vmul.f32 %v65, %v74
    %77 = vrot.lane.b32.xlu0 %v54, 16
    %v78 = vpop.permute.xlu0 %77
    %79 = vrot.lane.b32.xlu0 %v56, 16
    %v80 = vpop.permute.xlu0 %79
    %vm81 = vcmp.lt.s32.totalorder %v63, 16
    %v82 = vsel %vm81, %v78, %v80
    %v83 = vsel %vm81, %v80, %v78
    %v84 = vlaneseq
    %v85 = vshrl.u32 %v84, 7
    %v86 = vsub.s32 1, %v85
    %v87 = vrot.slane %v44, %v86
    %v88 = vlaneseq
    %v89 = vshrl.u32 %v88, 7
    %v90 = vsub.s32 1, %v89
    %v91 = vrot.slane %v45, %v90
    %v92 = vmul.f32 %v83, %v87
    %v93 = vmul.f32 %v82, %v91
    %94 = vrot.lane.b32.xlu0 %v54, 15
    %v95 = vpop.permute.xlu0 %94
    %96 = vrot.lane.b32.xlu0 %v56, 15
    %v97 = vpop.permute.xlu0 %96
    %vm98 = vcmp.lt.s32.totalorder %v63, 15
    %v99 = vsel %vm98, %v95, %v97
    %v100 = vsel %vm98, %v97, %v95
    %v101 = vlaneseq
    %v102 = vshrl.u32 %v101, 7
    %v103 = vsub.s32 2, %v102
    %v104 = vrot.slane %v44, %v103
    %v105 = vlaneseq
    %v106 = vshrl.u32 %v105, 7
    %v107 = vsub.s32 2, %v106
    %v108 = vrot.slane %v45, %v107
    %v109 = vmul.f32 %v100, %v104
    %v110 = vmul.f32 %v99, %v108
    %111 = vrot.lane.b32.xlu0 %v54, 1
    %v112 = vpop.permute.xlu0 %111
    %113 = vrot.lane.b32.xlu0 %v56, 1
    %v114 = vpop.permute.xlu0 %113
    %vm115 = vcmp.lt.s32.totalorder %v63, 1
    %v116 = vsel %vm115, %v112, %v114
    %v117 = vsel %vm115, %v114, %v112
    %v118 = vlaneseq
    %v119 = vshrl.u32 %v118, 7
    %v120 = vsub.s32 3, %v119
    %v121 = vrot.slane %v44, %v120
    %v122 = vlaneseq
    %v123 = vshrl.u32 %v122, 7
    %v124 = vsub.s32 3, %v123
    %v125 = vrot.slane %v45, %v124
    %v126 = vmul.f32 %v117, %v121
    %v127 = vmul.f32 %v116, %v125
    %128 = vrot.lane.b32.xlu0 %v54, 127
    %v129 = vpop.permute.xlu0 %128
    %130 = vrot.lane.b32.xlu0 %v56, 127
    %v131 = vpop.permute.xlu0 %130
    %vm132 = vcmp.lt.s32.totalorder %v63, 127
    %v133 = vsel %vm132, %v129, %v131
    %v134 = vsel %vm132, %v131, %v129
    %v135 = vlaneseq
    %v136 = vshrl.u32 %v135, 7
    %v137 = vsub.s32 5, %v136
    %v138 = vrot.slane %v44, %v137
    %v139 = vlaneseq
    %v140 = vshrl.u32 %v139, 7
    %v141 = vsub.s32 5, %v140
    %v142 = vrot.slane %v45, %v141
    %v143 = vmul.f32 %v133, %v138
    %v144 = vmul.f32 %v134, %v142
    %145 = vrot.lane.b32.xlu0 %v54, 113
    %v146 = vpop.permute.xlu0 %145
    %147 = vrot.lane.b32.xlu0 %v56, 113
    %v148 = vpop.permute.xlu0 %147
    %vm149 = vcmp.lt.s32.totalorder %v63, 113
    %v150 = vsel %vm149, %v146, %v148
    %v151 = vsel %vm149, %v148, %v146
    %v152 = vlaneseq
    %v153 = vshrl.u32 %v152, 7
    %v154 = vsub.s32 6, %v153
    %v155 = vrot.slane %v44, %v154
    %v156 = vlaneseq
    %v157 = vshrl.u32 %v156, 7
    %v158 = vsub.s32 6, %v157
    %v159 = vrot.slane %v45, %v158
    %v160 = vmul.f32 %v150, %v155
    %v161 = vmul.f32 %v151, %v159
    %162 = vrot.lane.b32.xlu0 %v54, 112
    %v163 = vpop.permute.xlu0 %162
    %164 = vrot.lane.b32.xlu0 %v56, 112
    %v165 = vpop.permute.xlu0 %164
    %vm166 = vcmp.lt.s32.totalorder %v63, 112
    %v167 = vsel %vm166, %v163, %v165
    %v168 = vsel %vm166, %v165, %v163
    %v169 = vlaneseq
    %v170 = vshrl.u32 %v169, 7
    %v171 = vsub.s32 7, %v170
    %v172 = vrot.slane %v44, %v171
    %v173 = vlaneseq
    %v174 = vshrl.u32 %v173, 7
    %v175 = vsub.s32 7, %v174
    %v176 = vrot.slane %v45, %v175
    %v177 = vmul.f32 %v167, %v172
    %v178 = vmul.f32 %v168, %v176
    %179 = vrot.lane.b32.xlu0 %v54, 111
    %v180 = vpop.permute.xlu0 %179
    %181 = vrot.lane.b32.xlu0 %v56, 111
    %v182 = vpop.permute.xlu0 %181
    %vm183 = vcmp.lt.s32.totalorder %v63, 111
    %v184 = vsel %vm183, %v180, %v182
    %v185 = vsel %vm183, %v182, %v180
    %v186 = vlaneseq
    %v187 = vshrl.u32 %v186, 7
    %v188 = vsub.s32 0, %v187
    %v189 = vrot.slane %v46, %v188
    %v190 = vlaneseq
    %v191 = vshrl.u32 %v190, 7
    %v192 = vsub.s32 0, %v191
    %v193 = vrot.slane %v47, %v192
    %v194 = vmul.f32 %v184, %v189
    %v195 = vmul.f32 %v185, %v193
    %v198 = vrot.slane %v92, 4
    %v199 = vrot.slane %v93, 4
    %v204 = vrot.slane %v126, 4
    %v205 = vrot.slane %v127, 4
    %v210 = vrot.slane %v143, 4
    %v211 = vrot.slane %v144, 4
    %v216 = vrot.slane %v177, 4
    %v217 = vrot.slane %v178, 4
    %vm220 = vcmask 1043456
    %v221 = vsel %vm220, %v75, %v198
    %v222 = vsel %vm220, %v76, %v199
    %v223 = vsel %vm220, %v109, %v204
    %v224 = vsel %vm220, %v110, %v205
    %v225 = vsel %vm220, %v54, %v210
    %v226 = vsel %vm220, %v56, %v211
    %v227 = vsel %vm220, %v160, %v216
    %v228 = vsel %vm220, %v161, %v217
    %vm229 = vcmask 293888
    %v231 = vsel %vm229, %v48, 0
    %v234 = vsel %vm220, %v194, 0
    %v237 = vsel %vm220, %v195, 0
    %239 = vmatprep.subr.mxu0 %v222
    %240 = vmatpush1.msra.mxu0 %v221
    %241 = vmatprep.subr.mxu0 %v224
    %242 = vmatpush1.msra.mxu0 %v223
    %243 = vmatprep.subr.mxu0 %v226
    %244 = vmatpush1.msra.mxu0 %v225
    %245 = vmatprep.subr.mxu0 %v228
    %246 = vmatpush1.msra.mxu0 %v227
    %247 = vmatprep.subr.mxu0 %v237
    %248 = vmatpush1.msra.mxu0 %v234
    %249 = vmatprep.subr.mxu0 0.0
    %250 = vmatpush1.msra.mxu0 0.0
    %251 = vmatprep.subr.mxu0 0.0
    %252 = vmatpush1.msra.mxu0 0.0
    %253 = vmatprep.subr.mxu0 0.0
    %254 = vmatpush1.msra.mxu0 0.0
    %255 = vmatprep.subr.mxu0 0.0
    %256 = vmatpush1.msra.mxu0 0.0
    %257 = vmatprep.subr.mxu0 0.0
    %258 = vmatpush1.msra.mxu0 0.0
    %259 = vmatprep.subr.mxu0 0.0
    %260 = vmatpush1.msra.mxu0 0.0
    %261 = vmatprep.subr.mxu0 0.0
    %262 = vmatpush1.msra.mxu0 0.0
    %263 = vmatprep.subr.mxu0 0.0
    %264 = vmatpush1.msra.mxu0 0.0
    %265 = vmatprep.subr.mxu0 0.0
    %266 = vmatpush1.msra.mxu0 0.0
    %267 = vmatprep.subr.mxu0 0.0
    %268 = vmatpush1.msra.mxu0 0.0
    %269 = vmatprep.subr.mxu0 0.0
    %270 = vmatpush1.msra.mxu0 0.0
    %271 = vmatprep.subr.mxu0 0.0
    %272 = vmatpush1.msra.mxu0 0.0
    %273 = vmatprep.subr.mxu0 0.0
    %274 = vmatpush1.msra.mxu0 0.0
    %275 = vmatprep.subr.mxu0 0.0
    %276 = vmatpush1.msra.mxu0 0.0
    %277 = vmatprep.subr.mxu0 0.0
    %278 = vmatpush1.msra.mxu0 0.0
    %279 = vmatprep.subr.mxu0 0.0
    %280 = vmatpush1.msra.mxu0 0.0
    %281 = vmatprep.subr.mxu0 0.0
    %282 = vmatpush1.msra.mxu0 0.0
    %283 = vmatprep.subr.mxu0 0.0
    %284 = vmatpush1.msra.mxu0 0.0
    %285 = vmatprep.subr.mxu0 0.0
    %286 = vmatpush1.msra.mxu0 0.0
    %287 = vmatprep.subr.mxu0 0.0
    %288 = vmatpush1.msra.mxu0 0.0
    %289 = vmatprep.subr.mxu0 0.0
    %290 = vmatpush1.msra.mxu0 0.0
    %291 = vmatprep.subr.mxu0 0.0
    %292 = vmatpush1.msra.mxu0 0.0
    %293 = vmatprep.subr.mxu0 0.0
    %294 = vmatpush1.msra.mxu0 0.0
    %295 = vmatprep.subr.mxu0 0.0
    %296 = vmatpush1.msra.mxu0 0.0
    %297 = vmatprep.subr.mxu0 0.0
    %298 = vmatpush1.msra.mxu0 0.0
    %299 = vmatprep.subr.mxu0 0.0
    %300 = vmatpush1.msra.mxu0 0.0
    %301 = vmatprep.subr.mxu0 0.0
    %302 = vmatpush1.msra.mxu0 0.0
    %303 = vmatprep.mubr.f32.mxu0 0.0
    %304 = vmatmul.mubr.f32.gmra.mrb[0].mxu0 %v231
    %v305 = vpop.f32.mrb[0].mxu0
    %v306 = vadd.f32 0.0, %v305
    %v307 = vpop.f32.mrb[0].mxu0
    %v308 = vadd.f32 0.0, %v307
    %309 = vdwg.mxu0
    %311 = vset.pattern.permute.xlu0 0
    %312 = vperm.xlu0 %311, %v50
    %v313 = vpop.permute.xlu0 %312
    %v315 = vmul.f32 %v306, %v313
    %v316 = vmul.f32 %v308, %v313
    %318 = vset.pattern.permute.xlu0 0
    %319 = vperm.xlu0 %318, %v51
    %v320 = vpop.permute.xlu0 %319
    %v322 = vadd.f32 %v315, %v320
    %v323 = vadd.f32 %v316, %v320
    %v324 = vmax.f32 %v322, 0.0
    %v325 = vmax.f32 %v323, 0.0
    %326 = vrot.lane.b32.xlu0 %v324, 17
    %v327 = vpop.permute.xlu0 %326
    %328 = vrot.lane.b32.xlu0 %v325, 17
    %v329 = vpop.permute.xlu0 %328
    %v330 = vsel %vm64, %v327, %v329
    %v331 = vsel %vm64, %v329, %v327
    %v332 = vmul.f32 %v331, %v70
    %v333 = vmul.f32 %v330, %v74
    %334 = vrot.lane.b32.xlu0 %v324, 16
    %v335 = vpop.permute.xlu0 %334
    %336 = vrot.lane.b32.xlu0 %v325, 16
    %v337 = vpop.permute.xlu0 %336
    %v338 = vsel %vm81, %v335, %v337
    %v339 = vsel %vm81, %v337, %v335
    %v340 = vmul.f32 %v339, %v87
    %v341 = vmul.f32 %v338, %v91
    %342 = vrot.lane.b32.xlu0 %v324, 15
    %v343 = vpop.permute.xlu0 %342
    %344 = vrot.lane.b32.xlu0 %v325, 15
    %v345 = vpop.permute.xlu0 %344
    %v346 = vsel %vm98, %v343, %v345
    %v347 = vsel %vm98, %v345, %v343
    %v348 = vmul.f32 %v347, %v104
    %v349 = vmul.f32 %v346, %v108
    %350 = vrot.lane.b32.xlu0 %v324, 1
    %v351 = vpop.permute.xlu0 %350
    %352 = vrot.lane.b32.xlu0 %v325, 1
    %v353 = vpop.permute.xlu0 %352
    %v354 = vsel %vm115, %v351, %v353
    %v355 = vsel %vm115, %v353, %v351
    %v356 = vmul.f32 %v355, %v121
    %v357 = vmul.f32 %v354, %v125
    %358 = vrot.lane.b32.xlu0 %v324, 127
    %v359 = vpop.permute.xlu0 %358
    %360 = vrot.lane.b32.xlu0 %v325, 127
    %v361 = vpop.permute.xlu0 %360
    %v362 = vsel %vm132, %v359, %v361
    %v363 = vsel %vm132, %v361, %v359
    %v364 = vmul.f32 %v362, %v138
    %v365 = vmul.f32 %v363, %v142
    %366 = vrot.lane.b32.xlu0 %v324, 113
    %v367 = vpop.permute.xlu0 %366
    %368 = vrot.lane.b32.xlu0 %v325, 113
    %v369 = vpop.permute.xlu0 %368
    %v370 = vsel %vm149, %v367, %v369
    %v371 = vsel %vm149, %v369, %v367
    %v372 = vmul.f32 %v370, %v155
    %v373 = vmul.f32 %v371, %v159
    %374 = vrot.lane.b32.xlu0 %v324, 112
    %v375 = vpop.permute.xlu0 %374
    %376 = vrot.lane.b32.xlu0 %v325, 112
    %v377 = vpop.permute.xlu0 %376
    %v378 = vsel %vm166, %v375, %v377
    %v379 = vsel %vm166, %v377, %v375
    %v380 = vmul.f32 %v378, %v172
    %v381 = vmul.f32 %v379, %v176
    %382 = vrot.lane.b32.xlu0 %v324, 111
    %v383 = vpop.permute.xlu0 %382
    %384 = vrot.lane.b32.xlu0 %v325, 111
    %v385 = vpop.permute.xlu0 %384
    %v386 = vsel %vm183, %v383, %v385
    %v387 = vsel %vm183, %v385, %v383
    %v388 = vmul.f32 %v386, %v189
    %v389 = vmul.f32 %v387, %v193
    %v392 = vrot.slane %v340, 6
    %v393 = vrot.slane %v341, 6
    %v398 = vrot.slane %v348, 4
    %v399 = vrot.slane %v349, 4
    %v404 = vrot.slane %v356, 2
    %v405 = vrot.slane %v357, 2
    %v410 = vrot.slane %v364, 6
    %v411 = vrot.slane %v365, 6
    %v416 = vrot.slane %v372, 4
    %v417 = vrot.slane %v373, 4
    %v422 = vrot.slane %v380, 2
    %v423 = vrot.slane %v381, 2
    %vm426 = vcmask 1041408
    %v427 = vsel %vm426, %v332, %v392
    %v428 = vsel %vm426, %v333, %v393
    %v429 = vsel %vm220, %v427, %v398
    %v430 = vsel %vm220, %v428, %v399
    %vm431 = vcmask 1045504
    %v432 = vsel %vm431, %v429, %v404
    %v433 = vsel %vm431, %v430, %v405
    %v434 = vsel %vm426, %v324, %v410
    %v435 = vsel %vm426, %v325, %v411
    %v436 = vsel %vm220, %v434, %v416
    %v437 = vsel %vm220, %v435, %v417
    %v438 = vsel %vm431, %v436, %v422
    %v439 = vsel %vm431, %v437, %v423
    %vm440 = vcmask 146432
    %v442 = vsel %vm440, %v49, 0
    %v445 = vsel %vm426, %v388, 0
    %v448 = vsel %vm426, %v389, 0
    %450 = vmatprep.subr.mxu0 %v433
    %451 = vmatpush1.msra.mxu0 %v432
    %452 = vmatprep.subr.mxu0 %v439
    %453 = vmatpush1.msra.mxu0 %v438
    %454 = vmatprep.subr.mxu0 %v448
    %455 = vmatpush1.msra.mxu0 %v445
    %456 = vmatprep.subr.mxu0 0.0
    %457 = vmatpush1.msra.mxu0 0.0
    %458 = vmatprep.subr.mxu0 0.0
    %459 = vmatpush1.msra.mxu0 0.0
    %460 = vmatprep.subr.mxu0 0.0
    %461 = vmatpush1.msra.mxu0 0.0
    %462 = vmatprep.subr.mxu0 0.0
    %463 = vmatpush1.msra.mxu0 0.0
    %464 = vmatprep.subr.mxu0 0.0
    %465 = vmatpush1.msra.mxu0 0.0
    %466 = vmatprep.subr.mxu0 0.0
    %467 = vmatpush1.msra.mxu0 0.0
    %468 = vmatprep.subr.mxu0 0.0
    %469 = vmatpush1.msra.mxu0 0.0
    %470 = vmatprep.subr.mxu0 0.0
    %471 = vmatpush1.msra.mxu0 0.0
    %472 = vmatprep.subr.mxu0 0.0
    %473 = vmatpush1.msra.mxu0 0.0
    %474 = vmatprep.subr.mxu0 0.0
    %475 = vmatpush1.msra.mxu0 0.0
    %476 = vmatprep.subr.mxu0 0.0
    %477 = vmatpush1.msra.mxu0 0.0
    %478 = vmatprep.subr.mxu0 0.0
    %479 = vmatpush1.msra.mxu0 0.0
    %480 = vmatprep.subr.mxu0 0.0
    %481 = vmatpush1.msra.mxu0 0.0
    %482 = vmatprep.subr.mxu0 0.0
    %483 = vmatpush1.msra.mxu0 0.0
    %484 = vmatprep.subr.mxu0 0.0
    %485 = vmatpush1.msra.mxu0 0.0
    %486 = vmatprep.subr.mxu0 0.0
    %487 = vmatpush1.msra.mxu0 0.0
    %488 = vmatprep.subr.mxu0 0.0
    %489 = vmatpush1.msra.mxu0 0.0
    %490 = vmatprep.subr.mxu0 0.0
    %491 = vmatpush1.msra.mxu0 0.0
    %492 = vmatprep.subr.mxu0 0.0
    %493 = vmatpush1.msra.mxu0 0.0
    %494 = vmatprep.subr.mxu0 0.0
    %495 = vmatpush1.msra.mxu0 0.0
    %496 = vmatprep.subr.mxu0 0.0
    %497 = vmatpush1.msra.mxu0 0.0
    %498 = vmatprep.subr.mxu0 0.0
    %499 = vmatpush1.msra.mxu0 0.0
    %500 = vmatprep.subr.mxu0 0.0
    %501 = vmatpush1.msra.mxu0 0.0
    %502 = vmatprep.subr.mxu0 0.0
    %503 = vmatpush1.msra.mxu0 0.0
    %504 = vmatprep.subr.mxu0 0.0
    %505 = vmatpush1.msra.mxu0 0.0
    %506 = vmatprep.subr.mxu0 0.0
    %507 = vmatpush1.msra.mxu0 0.0
    %508 = vmatprep.subr.mxu0 0.0
    %509 = vmatpush1.msra.mxu0 0.0
    %510 = vmatprep.subr.mxu0 0.0
    %511 = vmatpush1.msra.mxu0 0.0
    %512 = vmatprep.subr.mxu0 0.0
    %513 = vmatpush1.msra.mxu0 0.0
    %514 = vmatprep.mubr.f32.mxu0 0.0
    %515 = vmatmul.mubr.f32.gmra.mrb[0].mxu0 %v442
    %v516 = vpop.f32.mrb[0].mxu0
    %v517 = vadd.f32 0.0, %v516
    %v518 = vpop.f32.mrb[0].mxu0
    %v519 = vadd.f32 0.0, %v518
    %520 = vdwg.mxu0
    %522 = vset.pattern.permute.xlu0 0
    %523 = vperm.xlu0 %522, %v52
    %v524 = vpop.permute.xlu0 %523
    %v526 = vmul.f32 %v517, %v524
    %v527 = vmul.f32 %v519, %v524
    %529 = vset.pattern.permute.xlu0 0
    %530 = vperm.xlu0 %529, %v53
    %v531 = vpop.permute.xlu0 %530
    %v533 = vadd.f32 %v526, %v531
    %v534 = vadd.f32 %v527, %v531
    %v535 = vmax.f32 %v533, 0.0
    %v536 = vmax.f32 %v534, 0.0
    %v539 = vcombine.low %v535, %v536
    %v541 = vadd.f32 %v54, %v539
    %542 = vst [vmem:[#allocation5] sm:$0xff] %v541
    %s543 = scalar_lea.vmem [#allocation2], 8
    %v544 = vld [vmem:[%s543] sm:$0xff]
    %v546 = vcombine.high %v544, %v544
    %548 = vrot.lane.b32.xlu0 %v544, 17
    %v549 = vpop.permute.xlu0 %548
    %550 = vrot.lane.b32.xlu0 %v546, 17
    %v551 = vpop.permute.xlu0 %550
    %v552 = vsel %vm64, %v549, %v551
    %v553 = vsel %vm64, %v551, %v549
    %v554 = vmul.f32 %v553, %v70
    %v555 = vmul.f32 %v552, %v74
    %556 = vrot.lane.b32.xlu0 %v544, 16
    %v557 = vpop.permute.xlu0 %556
    %558 = vrot.lane.b32.xlu0 %v546, 16
    %v559 = vpop.permute.xlu0 %558
    %v560 = vsel %vm81, %v557, %v559
    %v561 = vsel %vm81, %v559, %v557
    %v562 = vmul.f32 %v561, %v87
    %v563 = vmul.f32 %v560, %v91
    %564 = vrot.lane.b32.xlu0 %v544, 15
    %v565 = vpop.permute.xlu0 %564
    %566 = vrot.lane.b32.xlu0 %v546, 15
    %v567 = vpop.permute.xlu0 %566
    %v568 = vsel %vm98, %v565, %v567
    %v569 = vsel %vm98, %v567, %v565
    %v570 = vmul.f32 %v569, %v104
    %v571 = vmul.f32 %v568, %v108
    %572 = vrot.lane.b32.xlu0 %v544, 1
    %v573 = vpop.permute.xlu0 %572
    %574 = vrot.lane.b32.xlu0 %v546, 1
    %v575 = vpop.permute.xlu0 %574
    %v576 = vsel %vm115, %v573, %v575
    %v577 = vsel %vm115, %v575, %v573
    %v578 = vmul.f32 %v577, %v121
    %v579 = vmul.f32 %v576, %v125
    %580 = vrot.lane.b32.xlu0 %v544, 127
    %v581 = vpop.permute.xlu0 %580
    %582 = vrot.lane.b32.xlu0 %v546, 127
    %v583 = vpop.permute.xlu0 %582
    %v584 = vsel %vm132, %v581, %v583
    %v585 = vsel %vm132, %v583, %v581
    %v586 = vmul.f32 %v584, %v138
    %v587 = vmul.f32 %v585, %v142
    %588 = vrot.lane.b32.xlu0 %v544, 113
    %v589 = vpop.permute.xlu0 %588
    %590 = vrot.lane.b32.xlu0 %v546, 113
    %v591 = vpop.permute.xlu0 %590
    %v592 = vsel %vm149, %v589, %v591
    %v593 = vsel %vm149, %v591, %v589
    %v594 = vmul.f32 %v592, %v155
    %v595 = vmul.f32 %v593, %v159
    %596 = vrot.lane.b32.xlu0 %v544, 112
    %v597 = vpop.permute.xlu0 %596
    %598 = vrot.lane.b32.xlu0 %v546, 112
    %v599 = vpop.permute.xlu0 %598
    %v600 = vsel %vm166, %v597, %v599
    %v601 = vsel %vm166, %v599, %v597
    %v602 = vmul.f32 %v600, %v172
    %v603 = vmul.f32 %v601, %v176
    %604 = vrot.lane.b32.xlu0 %v544, 111
    %v605 = vpop.permute.xlu0 %604
    %606 = vrot.lane.b32.xlu0 %v546, 111
    %v607 = vpop.permute.xlu0 %606
    %v608 = vsel %vm183, %v605, %v607
    %v609 = vsel %vm183, %v607, %v605
    %v610 = vmul.f32 %v608, %v189
    %v611 = vmul.f32 %v609, %v193
    %v614 = vrot.slane %v562, 4
    %v615 = vrot.slane %v563, 4
    %v620 = vrot.slane %v578, 4
    %v621 = vrot.slane %v579, 4
    %v626 = vrot.slane %v586, 4
    %v627 = vrot.slane %v587, 4
    %v632 = vrot.slane %v602, 4
    %v633 = vrot.slane %v603, 4
    %v636 = vsel %vm220, %v554, %v614
    %v637 = vsel %vm220, %v555, %v615
    %v638 = vsel %vm220, %v570, %v620
    %v639 = vsel %vm220, %v571, %v621
    %v640 = vsel %vm220, %v544, %v626
    %v641 = vsel %vm220, %v546, %v627
    %v642 = vsel %vm220, %v594, %v632
    %v643 = vsel %vm220, %v595, %v633
    %v645 = vsel %vm220, %v610, 0
    %v648 = vsel %vm220, %v611, 0
    %650 = vmatprep.subr.mxu0 %v637
    %651 = vmatpush1.msra.mxu0 %v636
    %652 = vmatprep.subr.mxu0 %v639
    %653 = vmatpush1.msra.mxu0 %v638
    %654 = vmatprep.subr.mxu0 %v641
    %655 = vmatpush1.msra.mxu0 %v640
    %656 = vmatprep.subr.mxu0 %v643
    %657 = vmatpush1.msra.mxu0 %v642
    %658 = vmatprep.subr.mxu0 %v648
    %659 = vmatpush1.msra.mxu0 %v645
    %660 = vmatprep.subr.mxu0 0.0
    %661 = vmatpush1.msra.mxu0 0.0
    %662 = vmatprep.subr.mxu0 0.0
    %663 = vmatpush1.msra.mxu0 0.0
    %664 = vmatprep.subr.mxu0 0.0
    %665 = vmatpush1.msra.mxu0 0.0
    %666 = vmatprep.subr.mxu0 0.0
    %667 = vmatpush1.msra.mxu0 0.0
    %668 = vmatprep.subr.mxu0 0.0
    %669 = vmatpush1.msra.mxu0 0.0
    %670 = vmatprep.subr.mxu0 0.0
    %671 = vmatpush1.msra.mxu0 0.0
    %672 = vmatprep.subr.mxu0 0.0
    %673 = vmatpush1.msra.mxu0 0.0
    %674 = vmatprep.subr.mxu0 0.0
    %675 = vmatpush1.msra.mxu0 0.0
    %676 = vmatprep.subr.mxu0 0.0
    %677 = vmatpush1.msra.mxu0 0.0
    %678 = vmatprep.subr.mxu0 0.0
    %679 = vmatpush1.msra.mxu0 0.0
    %680 = vmatprep.subr.mxu0 0.0
    %681 = vmatpush1.msra.mxu0 0.0
    %682 = vmatprep.subr.mxu0 0.0
    %683 = vmatpush1.msra.mxu0 0.0
    %684 = vmatprep.subr.mxu0 0.0
    %685 = vmatpush1.msra.mxu0 0.0
    %686 = vmatprep.subr.mxu0 0.0
    %687 = vmatpush1.msra.mxu0 0.0
    %688 = vmatprep.subr.mxu0 0.0
    %689 = vmatpush1.msra.mxu0 0.0
    %690 = vmatprep.subr.mxu0 0.0
    %691 = vmatpush1.msra.mxu0 0.0
    %692 = vmatprep.subr.mxu0 0.0
    %693 = vmatpush1.msra.mxu0 0.0
    %694 = vmatprep.subr.mxu0 0.0
    %695 = vmatpush1.msra.mxu0 0.0
    %696 = vmatprep.subr.mxu0 0.0
    %697 = vmatpush1.msra.mxu0 0.0
    %698 = vmatprep.subr.mxu0 0.0
    %699 = vmatpush1.msra.mxu0 0.0
    %700 = vmatprep.subr.mxu0 0.0
    %701 = vmatpush1.msra.mxu0 0.0
    %702 = vmatprep.subr.mxu0 0.0
    %703 = vmatpush1.msra.mxu0 0.0
    %704 = vmatprep.subr.mxu0 0.0
    %705 = vmatpush1.msra.mxu0 0.0
    %706 = vmatprep.subr.mxu0 0.0
    %707 = vmatpush1.msra.mxu0 0.0
    %708 = vmatprep.subr.mxu0 0.0
    %709 = vmatpush1.msra.mxu0 0.0
    %710 = vmatprep.subr.mxu0 0.0
    %711 = vmatpush1.msra.mxu0 0.0
    %712 = vmatprep.subr.mxu0 0.0
    %713 = vmatpush1.msra.mxu0 0.0
    %714 = vmatprep.mubr.f32.mxu0 0.0
    %715 = vmatmul.mubr.f32.gmra.mrb[0].mxu0 %v231
    %v716 = vpop.f32.mrb[0].mxu0
    %v717 = vadd.f32 0.0, %v716
    %v718 = vpop.f32.mrb[0].mxu0
    %v719 = vadd.f32 0.0, %v718
    %720 = vdwg.mxu0
    %v721 = vmul.f32 %v717, %v313
    %v722 = vmul.f32 %v719, %v313
    %v723 = vadd.f32 %v721, %v320
    %v724 = vadd.f32 %v722, %v320
    %v725 = vmax.f32 %v723, 0.0
    %v726 = vmax.f32 %v724, 0.0
    %727 = vrot.lane.b32.xlu0 %v725, 17
    %v728 = vpop.permute.xlu0 %727
    %729 = vrot.lane.b32.xlu0 %v726, 17
    %v730 = vpop.permute.xlu0 %729
    %v731 = vsel %vm64, %v728, %v730
    %v732 = vsel %vm64, %v730, %v728
    %v733 = vmul.f32 %v732, %v70
    %v734 = vmul.f32 %v731, %v74
    %735 = vrot.lane.b32.xlu0 %v725, 16
    %v736 = vpop.permute.xlu0 %735
    %737 = vrot.lane.b32.xlu0 %v726, 16
    %v738 = vpop.permute.xlu0 %737
    %v739 = vsel %vm81, %v736, %v738
    %v740 = vsel %vm81, %v738, %v736
    %v741 = vmul.f32 %v740, %v87
    %v742 = vmul.f32 %v739, %v91
    %743 = vrot.lane.b32.xlu0 %v725, 15
    %v744 = vpop.permute.xlu0 %743
    %745 = vrot.lane.b32.xlu0 %v726, 15
    %v746 = vpop.permute.xlu0 %745
    %v747 = vsel %vm98, %v744, %v746
    %v748 = vsel %vm98, %v746, %v744
    %v749 = vmul.f32 %v748, %v104
    %v750 = vmul.f32 %v747, %v108
    %751 = vrot.lane.b32.xlu0 %v725, 1
    %v752 = vpop.permute.xlu0 %751
    %753 = vrot.lane.b32.xlu0 %v726, 1
    %v754 = vpop.permute.xlu0 %753
    %v755 = vsel %vm115, %v752, %v754
    %v756 = vsel %vm115, %v754, %v752
    %v757 = vmul.f32 %v756, %v121
    %v758 = vmul.f32 %v755, %v125
    %759 = vrot.lane.b32.xlu0 %v725, 127
    %v760 = vpop.permute.xlu0 %759
    %761 = vrot.lane.b32.xlu0 %v726, 127
    %v762 = vpop.permute.xlu0 %761
    %v763 = vsel %vm132, %v760, %v762
    %v764 = vsel %vm132, %v762, %v760
    %v765 = vmul.f32 %v763, %v138
    %v766 = vmul.f32 %v764, %v142
    %767 = vrot.lane.b32.xlu0 %v725, 113
    %v768 = vpop.permute.xlu0 %767
    %769 = vrot.lane.b32.xlu0 %v726, 113
    %v770 = vpop.permute.xlu0 %769
    %v771 = vsel %vm149, %v768, %v770
    %v772 = vsel %vm149, %v770, %v768
    %v773 = vmul.f32 %v771, %v155
    %v774 = vmul.f32 %v772, %v159
    %775 = vrot.lane.b32.xlu0 %v725, 112
    %v776 = vpop.permute.xlu0 %775
    %777 = vrot.lane.b32.xlu0 %v726, 112
    %v778 = vpop.permute.xlu0 %777
    %v779 = vsel %vm166, %v776, %v778
    %v780 = vsel %vm166, %v778, %v776
    %v781 = vmul.f32 %v779, %v172
    %v782 = vmul.f32 %v780, %v176
    %783 = vrot.lane.b32.xlu0 %v725, 111
    %v784 = vpop.permute.xlu0 %783
    %785 = vrot.lane.b32.xlu0 %v726, 111
    %v786 = vpop.permute.xlu0 %785
    %v787 = vsel %vm183, %v784, %v786
    %v788 = vsel %vm183, %v786, %v784
    %v789 = vmul.f32 %v787, %v189
    %v790 = vmul.f32 %v788, %v193
    %v793 = vrot.slane %v741, 6
    %v794 = vrot.slane %v742, 6
    %v799 = vrot.slane %v749, 4
    %v800 = vrot.slane %v750, 4
    %v805 = vrot.slane %v757, 2
    %v806 = vrot.slane %v758, 2
    %v811 = vrot.slane %v765, 6
    %v812 = vrot.slane %v766, 6
    %v817 = vrot.slane %v773, 4
    %v818 = vrot.slane %v774, 4
    %v823 = vrot.slane %v781, 2
    %v824 = vrot.slane %v782, 2
    %v827 = vsel %vm426, %v733, %v793
    %v828 = vsel %vm426, %v734, %v794
    %v829 = vsel %vm220, %v827, %v799
    %v830 = vsel %vm220, %v828, %v800
    %v831 = vsel %vm431, %v829, %v805
    %v832 = vsel %vm431, %v830, %v806
    %v833 = vsel %vm426, %v725, %v811
    %v834 = vsel %vm426, %v726, %v812
    %v835 = vsel %vm220, %v833, %v817
    %v836 = vsel %vm220, %v834, %v818
    %v837 = vsel %vm431, %v835, %v823
    %v838 = vsel %vm431, %v836, %v824
    %v840 = vsel %vm426, %v789, 0
    %v843 = vsel %vm426, %v790, 0
    %845 = vmatprep.subr.mxu0 %v832
    %846 = vmatpush1.msra.mxu0 %v831
    %847 = vmatprep.subr.mxu0 %v838
    %848 = vmatpush1.msra.mxu0 %v837
    %849 = vmatprep.subr.mxu0 %v843
    %850 = vmatpush1.msra.mxu0 %v840
    %851 = vmatprep.subr.mxu0 0.0
    %852 = vmatpush1.msra.mxu0 0.0
    %853 = vmatprep.subr.mxu0 0.0
    %854 = vmatpush1.msra.mxu0 0.0
    %855 = vmatprep.subr.mxu0 0.0
    %856 = vmatpush1.msra.mxu0 0.0
    %857 = vmatprep.subr.mxu0 0.0
    %858 = vmatpush1.msra.mxu0 0.0
    %859 = vmatprep.subr.mxu0 0.0
    %860 = vmatpush1.msra.mxu0 0.0
    %861 = vmatprep.subr.mxu0 0.0
    %862 = vmatpush1.msra.mxu0 0.0
    %863 = vmatprep.subr.mxu0 0.0
    %864 = vmatpush1.msra.mxu0 0.0
    %865 = vmatprep.subr.mxu0 0.0
    %866 = vmatpush1.msra.mxu0 0.0
    %867 = vmatprep.subr.mxu0 0.0
    %868 = vmatpush1.msra.mxu0 0.0
    %869 = vmatprep.subr.mxu0 0.0
    %870 = vmatpush1.msra.mxu0 0.0
    %871 = vmatprep.subr.mxu0 0.0
    %872 = vmatpush1.msra.mxu0 0.0
    %873 = vmatprep.subr.mxu0 0.0
    %874 = vmatpush1.msra.mxu0 0.0
    %875 = vmatprep.subr.mxu0 0.0
    %876 = vmatpush1.msra.mxu0 0.0
    %877 = vmatprep.subr.mxu0 0.0
    %878 = vmatpush1.msra.mxu0 0.0
    %879 = vmatprep.subr.mxu0 0.0
    %880 = vmatpush1.msra.mxu0 0.0
    %881 = vmatprep.subr.mxu0 0.0
    %882 = vmatpush1.msra.mxu0 0.0
    %883 = vmatprep.subr.mxu0 0.0
    %884 = vmatpush1.msra.mxu0 0.0
    %885 = vmatprep.subr.mxu0 0.0
    %886 = vmatpush1.msra.mxu0 0.0
    %887 = vmatprep.subr.mxu0 0.0
    %888 = vmatpush1.msra.mxu0 0.0
    %889 = vmatprep.subr.mxu0 0.0
    %890 = vmatpush1.msra.mxu0 0.0
    %891 = vmatprep.subr.mxu0 0.0
    %892 = vmatpush1.msra.mxu0 0.0
    %893 = vmatprep.subr.mxu0 0.0
    %894 = vmatpush1.msra.mxu0 0.0
    %895 = vmatprep.subr.mxu0 0.0
    %896 = vmatpush1.msra.mxu0 0.0
    %897 = vmatprep.subr.mxu0 0.0
    %898 = vmatpush1.msra.mxu0 0.0
    %899 = vmatprep.subr.mxu0 0.0
    %900 = vmatpush1.msra.mxu0 0.0
    %901 = vmatprep.subr.mxu0 0.0
    %902 = vmatpush1.msra.mxu0 0.0
    %903 = vmatprep.subr.mxu0 0.0
    %904 = vmatpush1.msra.mxu0 0.0
    %905 = vmatprep.subr.mxu0 0.0
    %906 = vmatpush1.msra.mxu0 0.0
    %907 = vmatprep.subr.mxu0 0.0
    %908 = vmatpush1.msra.mxu0 0.0
    %909 = vmatprep.mubr.f32.mxu0 0.0
    %910 = vmatmul.mubr.f32.gmra.mrb[0].mxu0 %v442
    %v911 = vpop.f32.mrb[0].mxu0
    %v912 = vadd.f32 0.0, %v911
    %v913 = vpop.f32.mrb[0].mxu0
    %v914 = vadd.f32 0.0, %v913
    %915 = vdwg.mxu0
    %v916 = vmul.f32 %v912, %v524
    %v917 = vmul.f32 %v914, %v524
    %v918 = vadd.f32 %v916, %v531
    %v919 = vadd.f32 %v917, %v531
    %v920 = vmax.f32 %v918, 0.0
    %v921 = vmax.f32 %v919, 0.0
    %v924 = vcombine.low %v920, %v921
    %v926 = vadd.f32 %v544, %v924
    %s927 = scalar_lea.vmem [#allocation5], 8
    %928 = vst [vmem:[%s927] sm:$0xff] %v926
    // Predicated region
    $region38: #{tpu_custom_call.1} parent=1 // pred_check
      _
    $region39: #{tpu_custom_call.1} parent=1 // pred_check_branch
      %930 = sbr.rel (0) target = $region41
    $region40: #{tpu_custom_call.1} parent=1 // pred_region
      %s932 = ssub.s32 256, 256
      %933 = vsyncadd [#allocation4], %s932
      %s934 = sshll.u32 [#allocation5], 4
      %s935 = int_to_ptr.vmem [resolvable:$true] %s934
      %940 = dma.vmem_to_hbm [thread:$0]  %s935, 256, %s8, [#allocation4], 128, 128, 8
    $region41: #{tpu_custom_call.1} parent=1 // pred_fallthru
      _
    // Predicated region
    $region42: #{tpu_custom_call.1} parent=1 // pred_check
      _
    $region43: #{tpu_custom_call.1} parent=1 // pred_check_branch
      %942 = sbr.rel (0) target = $region45
    $region44: #{tpu_custom_call.1} parent=1 // pred_region
      %943 = dma.done [#allocation4], 256
    $region45: #{tpu_custom_call.1} parent=1 // pred_fallthru
      _
    %944 = vsyncpa [#allocation3], 1
    %945 = vsyncpa [#allocation4], 1

</llo_original>
